<compile_context>
chip_gen: v6e
topology: v6e:2x2x1
jax: 0.10.0
libtpu: 0.0.40
codegen_flags: <defaults>
</compile_context>

<pallas_src>
import functools

import jax
import jax.numpy as jnp
from jax.experimental import pallas as pl
from jax.experimental.pallas import tpu as pltpu


_MAX_BLOCK_BYTES = 4 << 20  # ~4 MiB per block buffer (each ref is double-buffered)


def _sublane(itemsize):
    """Sublane packing for the dtype: f32 -> 8, bf16 -> 16, int8/fp8 -> 32."""
    return max(8, 32 // max(1, int(itemsize)))


def _num_tensorcores():
    """2 on v7x-class chips (megacore), else 1. Conservative on failure."""
    try:
        kind = jax.devices()[0].device_kind.lower()
        if "v7" in kind or "7x" in kind:
            return 2
    except Exception:
        pass
    return 1


def _vmem_capacity_bytes():
    try:
        return int(pltpu.get_tpu_info().vmem_capacity_bytes)
    except Exception:
        return 64 << 20  # assume the smallest (v7x per-TC) capacity


def _choose_block(R, F, itemsize):
    """Pick a lane-dense (rows, lanes) block for a flattened (R, F) array."""
    sub = _sublane(itemsize)

    # Lane (last) dim: full row if it fits the budget, else a multiple of 128,
    # preferring one that divides F (no ragged masked-store tail block).
    if F <= 128 or sub * F * itemsize <= _MAX_BLOCK_BYTES:
        bf = F
    else:
        budget_lanes = (_MAX_BLOCK_BYTES // (sub * itemsize)) // 128 * 128
        budget_lanes = max(128, min(budget_lanes, (F // 128) * 128))
        bf = budget_lanes
        cand = budget_lanes
        while cand >= max(128, budget_lanes // 2):
            if F % cand == 0:
                bf = cand
                break
            cand -= 128

    # Sublane (second-minor) dim: multiple of the dtype packing, or full R.
    if R <= sub:
        br = R
    else:
        br = (_MAX_BLOCK_BYTES // (bf * itemsize)) // sub * sub
        br = max(sub, br)
        if br >= R:
            br = R

    # On multi-TC chips only: keep >=2 grid steps so both TensorCores work.
    # Split along R (keeps every store full lane width); only for tensors big
    # enough that the extra grid step is not pure overhead.
    if (_num_tensorcores() > 1
            and pl.cdiv(R, br) * pl.cdiv(F, bf) == 1
            and R * F * itemsize >= (1 << 20)):
        half_r = ((R // 2 + sub - 1) // sub) * sub
        if sub <= half_r < R:
            br = half_r
        else:
            half_f = ((F // 2 + 127) // 128) * 128
            if 128 <= half_f < F:
                bf = half_f
    return br, bf


def _center_mask_kernel(*refs, n_tensors, H, W, bf):
    """refs = (*in_refs, *out_refs); each block is (br, bf) of a (N*C, H*W) view."""
    in_refs, out_refs = refs[:n_tensors], refs[n_tensors:]
    sh, sw = H // 4, W // 4
    eh, ew = sh + H // 2, sw + W // 2

    pow2_w = (W & (W - 1)) == 0          # static Python bool
    shift = W.bit_length() - 1

    base = pl.program_id(1) * bf         # first flat index of this lane block
    last = base + (bf - 1)               # last flat index of this lane block

    # Scalar classification of the block (cheap; avoids all vector mask work
    # on clean blocks).
    if pow2_w:
        r0, c0 = base >> shift, base & (W - 1)
        r1, c1 = last >> shift, last & (W - 1)
    else:
        r0, c0 = base // W, base % W
        r1, c1 = last // W, last % W

    outside = jnp.logical_or(r1 < sh, r0 >= eh)
    outside = jnp.logical_or(
        outside, (r0 == r1) & jnp.logical_or(c1 < sw, c0 >= ew))
    inside = (r0 == r1) & (r0 >= sh) & (r0 < eh) & (c0 >= sw) & (c1 < ew)

    @pl.when(outside)
    def _():
        # Fully outside the kept box: stores can issue immediately, no select.
        for o_ref in out_refs:
            o_ref[...] = jnp.zeros_like(o_ref)

    @pl.when(inside)
    def _():
        # Fully inside the kept box: straight copy.
        for x_ref, o_ref in zip(in_refs, out_refs):
            o_ref[...] = x_ref[...]

    @pl.when(jnp.logical_not(jnp.logical_or(outside, inside)))
    def _():
        # Straddling block: masked select with a (1, bf) row-vector mask that
        # broadcasts along the N*C sublane axis (mask is invariant there).
        flat = base + jax.lax.broadcasted_iota(jnp.int32, (1, bf), 1)
        if pow2_w:
            row = flat >> shift
            col = flat & (W - 1)
        else:
            row = flat // W
            col = flat - row * W
        keep = (row >= sh) & (row < eh) & (col >= sw) & (col < ew)
        for x_ref, o_ref in zip(in_refs, out_refs):
            x = x_ref[...]
            o_ref[...] = jnp.where(keep, x, jnp.zeros_like(x))


def _crop_pad_many(xs):
    """Run the fused mask kernel on a list of same-shaped NCHW tensors."""
    N, C, H, W = xs[0].shape
    R, F = N * C, H * W
    itemsize = xs[0].dtype.itemsize
    br, bf = _choose_block(R, F, itemsize)
    grid = (pl.cdiv(R, br), pl.cdiv(F, bf))
    n = len(xs)

    # VMEM budget from actual need: in+out refs, double-buffered, + headroom;
    # capped against the queried per-core capacity (generation-aware).
    block_bytes = br * bf * itemsize
    need = n * 2 * 2 * block_bytes
    cap = _vmem_capacity_bytes()
    vmem_limit = max(need + (8 << 20), 16 << 20)
    vmem_limit = int(min(vmem_limit, max(need + (4 << 20), int(0.75 * cap))))

    kernel = functools.partial(_center_mask_kernel, n_tensors=n, H=H, W=W, bf=bf)
    spec = pl.BlockSpec((br, bf), lambda i, j: (i, j))

    outs = pl.pallas_call(
        kernel,
        out_shape=tuple(jax.ShapeDtypeStruct((R, F), x.dtype) for x in xs),
        grid=grid,
        in_specs=[spec for _ in xs],
        out_specs=tuple(spec for _ in xs),
        compiler_params=pltpu.CompilerParams(
            dimension_semantics=("parallel", "parallel"),
            vmem_limit_bytes=vmem_limit,
        ),
    )(*[x.reshape(R, F) for x in xs])   # reshape is layout-preserving for NCHW
    if not isinstance(outs, (tuple, list)):
        outs = (outs,)
    return tuple(o.reshape(x.shape) for o, x in zip(outs, xs))


def center_crop_pad(x):
    """Pallas equivalent of: crop the centered half region, zero-pad back."""
    return _crop_pad_many([x])[0]


@jax.jit
def center_cropper_forward(x_c, x_v):
    """Pallas implementation of CenterCropper.forward (returns a pair)."""
    if x_c.shape == x_v.shape and x_c.dtype == x_v.dtype:
        y_c, y_v = _crop_pad_many([x_c, x_v])   # single fused launch
        return y_c, y_v
    return center_crop_pad(x_c), center_crop_pad(x_v)


def _reference(x):
    # Pure-JAX reference mirroring the PyTorch crop + pad semantics.
    N, C, H, W = x.shape
    sh, sw = H // 4, W // 4
    eh, ew = sh + H // 2, sw + W // 2
    center = x[:, :, sh:eh, sw:ew]
    return jnp.pad(center,
                   ((0, 0), (0, 0), (sh, H - eh), (sw, W - ew)),
                   mode="constant", constant_values=0)


if __name__ == "__main__":
    key = jax.random.PRNGKey(0)
    k1, k2, k3 = jax.random.split(key, 3)

    # Primary test (fused single-launch path), NCHW as in the module.
    x_c = jax.random.normal(k1, (2, 4, 16, 16), dtype=jnp.float32)
    x_v = jax.random.normal(k2, (2, 4, 16, 16), dtype=jnp.float32)
    y_c, y_v = center_cropper_forward(x_c, x_v)
    jax.block_until_ready((y_c, y_v))
    assert y_c.shape == x_c.shape and y_v.shape == x_v.shape
    assert jnp.allclose(y_c, _reference(x_c)), "x_c output mismatch"
    assert jnp.allclose(y_v, _reference(x_v)), "x_v output mismatch"

    # Different spatial shapes per tensor (non-fused fallback path).
    x_v2 = jax.random.normal(k3, (2, 4, 8, 8), dtype=jnp.float32)
    y_c2, y_v2 = center_cropper_forward(x_c, x_v2)
    jax.block_until_ready((y_c2, y_v2))
    assert jnp.allclose(y_c2, _reference(x_c)), "x_c (fallback) output mismatch"
    assert jnp.allclose(y_v2, _reference(x_v2)), "x_v (fallback) output mismatch"

    # Non power-of-two W / odd crop boundaries exercise the div/mod mask path.
    x_odd = jax.random.normal(k3, (1, 3, 12, 10), dtype=jnp.float32)
    y_odd = center_crop_pad(x_odd)
    jax.block_until_ready(y_odd)
    assert jnp.allclose(y_odd, _reference(x_odd)), "odd-shape output mismatch"

    print("KERNEL_OK")
</pallas_src>

<mosaic_0001>
module attributes {stable_mosaic.version = 11 : i64} {
  func.func @_center_mask_kernel(%arg0: i32, %arg1: i32, %arg2: memref<8x256xf32, #tpu.memory_space<vmem>>, %arg3: memref<8x256xf32, #tpu.memory_space<vmem>>, %arg4: memref<8x256xf32, #tpu.memory_space<vmem>>, %arg5: memref<8x256xf32, #tpu.memory_space<vmem>>) attributes {dimension_semantics = [#tpu.dimension_semantics<parallel>, #tpu.dimension_semantics<parallel>], iteration_bounds = array<i64: 1, 1>, scalar_prefetch = 0 : i64, scratch_operands = 0 : i64, tpu.core_type = #tpu.core_type<tc>, window_params = [{transform_indices = @transform_0, window_bounds = array<i64: 8, 256>}, {transform_indices = @transform_1, window_bounds = array<i64: 8, 256>}, {transform_indices = @transform_2, window_bounds = array<i64: 8, 256>}, {transform_indices = @transform_3, window_bounds = array<i64: 8, 256>}]} {
    %c256_i32 = arith.constant 256 : i32
    %0 = arith.muli %arg1, %c256_i32 : i32
    %c255_i32 = arith.constant 255 : i32
    %1 = arith.addi %0, %c255_i32 : i32
    %c4_i32 = arith.constant 4 : i32
    %2 = arith.shrsi %0, %c4_i32 : i32
    %c15_i32 = arith.constant 15 : i32
    %3 = arith.andi %0, %c15_i32 : i32
    %c4_i32_0 = arith.constant 4 : i32
    %4 = arith.shrsi %1, %c4_i32_0 : i32
    %c15_i32_1 = arith.constant 15 : i32
    %5 = arith.andi %1, %c15_i32_1 : i32
    %c4_i32_2 = arith.constant 4 : i32
    %6 = arith.cmpi slt, %4, %c4_i32_2 : i32
    %c12_i32 = arith.constant 12 : i32
    %7 = arith.cmpi sge, %2, %c12_i32 : i32
    %8 = arith.ori %6, %7 : i1
    %9 = arith.cmpi eq, %2, %4 : i32
    %c4_i32_3 = arith.constant 4 : i32
    %10 = arith.cmpi slt, %5, %c4_i32_3 : i32
    %c12_i32_4 = arith.constant 12 : i32
    %11 = arith.cmpi sge, %3, %c12_i32_4 : i32
    %12 = arith.ori %10, %11 : i1
    %13 = arith.andi %9, %12 : i1
    %14 = arith.ori %8, %13 : i1
    %15 = arith.cmpi eq, %2, %4 : i32
    %c4_i32_5 = arith.constant 4 : i32
    %16 = arith.cmpi sge, %2, %c4_i32_5 : i32
    %17 = arith.andi %15, %16 : i1
    %c12_i32_6 = arith.constant 12 : i32
    %18 = arith.cmpi slt, %2, %c12_i32_6 : i32
    %19 = arith.andi %17, %18 : i1
    %c4_i32_7 = arith.constant 4 : i32
    %20 = arith.cmpi sge, %3, %c4_i32_7 : i32
    %21 = arith.andi %19, %20 : i1
    %c12_i32_8 = arith.constant 12 : i32
    %22 = arith.cmpi slt, %5, %c12_i32_8 : i32
    %23 = arith.andi %21, %22 : i1
    %24 = arith.extui %14 : i1 to i32
    %c0_i32 = arith.constant 0 : i32
    %25 = arith.cmpi ne, %24, %c0_i32 : i32
    scf.if %25 {
      %cst = arith.constant 0.000000e+00 : f32
      %32 = vector.broadcast %cst : f32 to vector<8x256xf32>
      %c0 = arith.constant 0 : index
      %c0_11 = arith.constant 0 : index
      %33 = vector.load %arg4[%c0, %c0_11] : memref<8x256xf32, #tpu.memory_space<vmem>>, vector<8x256xf32>
      tpu.vector_store %arg4[%c0, %c0_11], %32 {strides = array<i32>} : memref<8x256xf32, #tpu.memory_space<vmem>>, vector<8x256xf32>,
      %cst_12 = arith.constant 0.000000e+00 : f32
      %34 = vector.broadcast %cst_12 : f32 to vector<8x256xf32>
      %c0_13 = arith.constant 0 : index
      %c0_14 = arith.constant 0 : index
      %35 = vector.load %arg5[%c0_13, %c0_14] : memref<8x256xf32, #tpu.memory_space<vmem>>, vector<8x256xf32>
      tpu.vector_store %arg5[%c0_13, %c0_14], %34 {strides = array<i32>} : memref<8x256xf32, #tpu.memory_space<vmem>>, vector<8x256xf32>,
    } else {
    }
    %26 = arith.extui %23 : i1 to i32
    %c0_i32_9 = arith.constant 0 : i32
    %27 = arith.cmpi ne, %26, %c0_i32_9 : i32
    scf.if %27 {
      %c0 = arith.constant 0 : index
      %c0_11 = arith.constant 0 : index
      %32 = vector.load %arg2[%c0, %c0_11] : memref<8x256xf32, #tpu.memory_space<vmem>>, vector<8x256xf32>
      %c0_12 = arith.constant 0 : index
      %c0_13 = arith.constant 0 : index
      %33 = vector.load %arg4[%c0_12, %c0_13] : memref<8x256xf32, #tpu.memory_space<vmem>>, vector<8x256xf32>
      tpu.vector_store %arg4[%c0_12, %c0_13], %32 {strides = array<i32>} : memref<8x256xf32, #tpu.memory_space<vmem>>, vector<8x256xf32>,
      %c0_14 = arith.constant 0 : index
      %c0_15 = arith.constant 0 : index
      %34 = vector.load %arg3[%c0_14, %c0_15] : memref<8x256xf32, #tpu.memory_space<vmem>>, vector<8x256xf32>
      %c0_16 = arith.constant 0 : index
      %c0_17 = arith.constant 0 : index
      %35 = vector.load %arg5[%c0_16, %c0_17] : memref<8x256xf32, #tpu.memory_space<vmem>>, vector<8x256xf32>
      tpu.vector_store %arg5[%c0_16, %c0_17], %34 {strides = array<i32>} : memref<8x256xf32, #tpu.memory_space<vmem>>, vector<8x256xf32>,
    } else {
    }
    %28 = arith.ori %14, %23 : i1
    %true = arith.constant true
    %29 = arith.xori %28, %true : i1
    %30 = arith.extui %29 : i1 to i32
    %c0_i32_10 = arith.constant 0 : i32
    %31 = arith.cmpi ne, %30, %c0_i32_10 : i32
    scf.if %31 {
      %32 = tpu.iota {dimensions = array<i32: 1>} : vector<1x256xi32>
      %33 = vector.broadcast %0 : i32 to vector<1x256xi32>
      %34 = arith.addi %33, %32 : vector<1x256xi32>
      %c4_i32_11 = arith.constant 4 : i32
      %35 = vector.broadcast %c4_i32_11 : i32 to vector<1x256xi32>
      %36 = arith.shrsi %34, %35 : vector<1x256xi32>
      %c15_i32_12 = arith.constant 15 : i32
      %37 = vector.broadcast %c15_i32_12 : i32 to vector<1x256xi32>
      %38 = arith.andi %34, %37 : vector<1x256xi32>
      %c4_i32_13 = arith.constant 4 : i32
      %39 = vector.broadcast %c4_i32_13 : i32 to vector<1x256xi32>
      %40 = arith.cmpi sge, %36, %39 : vector<1x256xi32>
      %c12_i32_14 = arith.constant 12 : i32
      %41 = vector.broadcast %c12_i32_14 : i32 to vector<1x256xi32>
      %42 = arith.cmpi slt, %36, %41 : vector<1x256xi32>
      %43 = arith.andi %40, %42 : vector<1x256xi1>
      %c4_i32_15 = arith.constant 4 : i32
      %44 = vector.broadcast %c4_i32_15 : i32 to vector<1x256xi32>
      %45 = arith.cmpi sge, %38, %44 : vector<1x256xi32>
      %46 = arith.andi %43, %45 : vector<1x256xi1>
      %c12_i32_16 = arith.constant 12 : i32
      %47 = vector.broadcast %c12_i32_16 : i32 to vector<1x256xi32>
      %48 = arith.cmpi slt, %38, %47 : vector<1x256xi32>
      %49 = arith.andi %46, %48 : vector<1x256xi1>
      %c0 = arith.constant 0 : index
      %c0_17 = arith.constant 0 : index
      %50 = vector.load %arg2[%c0, %c0_17] : memref<8x256xf32, #tpu.memory_space<vmem>>, vector<8x256xf32>
      %cst = arith.constant 0.000000e+00 : f32
      %51 = vector.broadcast %cst : f32 to vector<8x256xf32>
      %52 = vector.shape_cast %49 : vector<1x256xi1> to vector<1x256xi1>
      %53 = vector.broadcast %52 : vector<1x256xi1> to vector<8x256xi1>
      %54 = arith.select %53, %50, %51 : vector<8x256xi1>, vector<8x256xf32>
      %c0_18 = arith.constant 0 : index
      %c0_19 = arith.constant 0 : index
      %55 = vector.load %arg4[%c0_18, %c0_19] : memref<8x256xf32, #tpu.memory_space<vmem>>, vector<8x256xf32>
      tpu.vector_store %arg4[%c0_18, %c0_19], %54 {strides = array<i32>} : memref<8x256xf32, #tpu.memory_space<vmem>>, vector<8x256xf32>,
      %c0_20 = arith.constant 0 : index
      %c0_21 = arith.constant 0 : index
      %56 = vector.load %arg3[%c0_20, %c0_21] : memref<8x256xf32, #tpu.memory_space<vmem>>, vector<8x256xf32>
      %cst_22 = arith.constant 0.000000e+00 : f32
      %57 = vector.broadcast %cst_22 : f32 to vector<8x256xf32>
      %58 = vector.shape_cast %49 : vector<1x256xi1> to vector<1x256xi1>
      %59 = vector.broadcast %58 : vector<1x256xi1> to vector<8x256xi1>
      %60 = arith.select %59, %56, %57 : vector<8x256xi1>, vector<8x256xf32>
      %c0_23 = arith.constant 0 : index
      %c0_24 = arith.constant 0 : index
      %61 = vector.load %arg5[%c0_23, %c0_24] : memref<8x256xf32, #tpu.memory_space<vmem>>, vector<8x256xf32>
      tpu.vector_store %arg5[%c0_23, %c0_24], %60 {strides = array<i32>} : memref<8x256xf32, #tpu.memory_space<vmem>>, vector<8x256xf32>,
    } else {
    }
    return
  }
  func.func @transform_0(%arg0: i32, %arg1: i32) -> (i32, i32) {
    %c0_i32 = arith.constant 0 : i32
    return %arg0, %arg1 : i32, i32
  }
  func.func @transform_1(%arg0: i32, %arg1: i32) -> (i32, i32) {
    %c0_i32 = arith.constant 0 : i32
    return %arg0, %arg1 : i32, i32
  }
  func.func @transform_2(%arg0: i32, %arg1: i32) -> (i32, i32) {
    %c0_i32 = arith.constant 0 : i32
    return %arg0, %arg1 : i32, i32
  }
  func.func @transform_3(%arg0: i32, %arg1: i32) -> (i32, i32) {
    %c0_i32 = arith.constant 0 : i32
    return %arg0, %arg1 : i32, i32
  }
}

</mosaic_0001>

<llo_original>
// kernel: center_cropper_forward.1
$region0: #{center_cropper_forward.1}
  #allocation0 [shape = 'u32[]', space=smem, size = 0x4, offset = 0x4, fixed_abs, tag = 'smem constant byte address 0x4 - core index']
  #allocation1 [shape = 'u32[144,128]{1,0:T(1,128)}', space=vmem, size = 0x12000, scoped, tag = 'internal scratch']
  %s0 = inlined_call_operand.vmem [shape: f32[8,256], index: 0, kind: input, shape index: {}]
  %s1 = inlined_call_operand.vmem [shape: f32[8,256], index: 1, kind: input, shape index: {}]
  %s2 = inlined_call_operand.vmem [shape: f32[8,256], index: 2, kind: output, shape index: {0}]
  %s3 = inlined_call_operand.vmem [shape: f32[8,256], index: 3, kind: output, shape index: {1}]
  %4 = xla_tuple %s2, %s3
  %s5 = sld [smem:[#allocation0]]
  $region38: #{center_cropper_forward.1} parent=0
    _
  %s7 = ssub.s32 1, %s5
  %s8 = scalar_select 0, %s7, %s5
  // Predicated region
  $region2: #{center_cropper_forward.1} parent=0 // pred_check
    _
  $region3: #{center_cropper_forward.1} parent=0 // pred_check_branch
    %10 = sbr.rel (0) target = $region5
  $region4: #{center_cropper_forward.1} parent=0 // pred_region
    _
  $region5: #{center_cropper_forward.1} parent=0 // pred_fallthru
    _
  // Predicated region
  $region6: #{center_cropper_forward.1} parent=0 // pred_check
    _
  $region7: #{center_cropper_forward.1} parent=0 // pred_check_branch
    %12 = sbr.rel (0) target = $region9
  $region8: #{center_cropper_forward.1} parent=0 // pred_region
    _
  $region9: #{center_cropper_forward.1} parent=0 // pred_fallthru
    _
  %s13 = smul.u32 0, 256
  %s14 = sadd.s32 %s13, 255
  %s15 = sshra.s32 %s13, 4
  %s16 = sand.u32 %s13, 15
  %s17 = sshra.s32 %s14, 4
  %s18 = sand.u32 %s14, 15
  %p19 = scmp.lt.s32.totalorder %s17, 4
  %p20 = scmp.ge.s32.totalorder %s15, 12
  %p21 = por %p19, %p20
  %p22 = scmp.eq.s32.totalorder %s15, %s17
  %p23 = scmp.lt.s32.totalorder %s18, 4
  %p24 = scmp.ge.s32.totalorder %s16, 12
  %p25 = por %p23, %p24
  %p26 = pnand %p22, %p25
  %p27 = pneg %p26
  %p28 = por %p21, %p27
  %p29 = scmp.ge.s32.totalorder %s15, 4
  %p30 = pnand %p22, %p29
  %p31 = pneg %p30
  %p32 = scmp.lt.s32.totalorder %s15, 12
  %p33 = pnand %p31, %p32
  %p34 = pneg %p33
  %p35 = scmp.ge.s32.totalorder %s16, 4
  %p36 = pnand %p34, %p35
  %p37 = pneg %p36
  %p38 = scmp.lt.s32.totalorder %s18, 12
  %p39 = pnand %p37, %p38
  %p40 = pneg %p39
  // Predicated region
  $region10: #{center_cropper_forward.1} parent=0 // pred_check
    %p41 = pneg %p28
  $region11: #{center_cropper_forward.1} parent=0 // pred_check_branch
    %43 = sbr.rel (%p41) target = $region13
  $region12: #{center_cropper_forward.1} parent=0 // pred_region
    %44 = vst [vmem:[%s2] sm:$0xff] 0.0
    %45 = vst [vmem:[%s2 + $0x8] sm:$0xff] 0.0
    %46 = vst [vmem:[%s3] sm:$0xff] 0.0
    %47 = vst [vmem:[%s3 + $0x8] sm:$0xff] 0.0
  $region13: #{center_cropper_forward.1} parent=0 // pred_fallthru
    _
  // Predicated region
  $region14: #{center_cropper_forward.1} parent=0 // pred_check
    _
  $region15: #{center_cropper_forward.1} parent=0 // pred_check_branch
    %49 = sbr.rel (%p39) target = $region17
  $region16: #{center_cropper_forward.1} parent=0 // pred_region
    %v50 = vld [vmem:[%s0] sm:$0xff]
    %v51 = vld [vmem:[%s0 + $0x8] sm:$0xff]
    %52 = vst [vmem:[%s2] sm:$0xff] %v50
    %53 = vst [vmem:[%s2 + $0x8] sm:$0xff] %v51
    %v54 = vld [vmem:[%s1] sm:$0xff]
    %v55 = vld [vmem:[%s1 + $0x8] sm:$0xff]
    %56 = vst [vmem:[%s3] sm:$0xff] %v54
    %57 = vst [vmem:[%s3 + $0x8] sm:$0xff] %v55
  $region17: #{center_cropper_forward.1} parent=0 // pred_fallthru
    _
  %p58 = por %p28, %p40
  %p59 = pneg %p58
  // Predicated region
  $region18: #{center_cropper_forward.1} parent=0 // pred_check
    _
  $region19: #{center_cropper_forward.1} parent=0 // pred_check_branch
    %61 = sbr.rel (%p58) target = $region21
  $region20: #{center_cropper_forward.1} parent=0 // pred_region
    %v62 = vlaneseq
    %v63 = vand.u32 %v62, 127
    %v64 = vadd.s32 %v63, 128
    %v65 = vstv %s13
    %v66 = vadd.s32 %v65, %v63
    %v67 = vadd.s32 %v65, %v64
    %v68 = vshra.s32 %v66, 4
    %v69 = vshra.s32 %v67, 4
    %v70 = vand.u32 %v66, 15
    %v71 = vand.u32 %v67, 15
    %vm72 = vcmp.ge.s32.totalorder %v68, 4
    %vm73 = vcmp.ge.s32.totalorder %v69, 4
    %vm74 = vcmp.lt.s32.totalorder %v68, 12
    %vm75 = vcmp.lt.s32.totalorder %v69, 12
    %vm76 = vmand %vm72, %vm74
    %vm77 = vmand %vm73, %vm75
    %vm78 = vcmp.ge.s32.totalorder %v70, 4
    %vm79 = vcmp.ge.s32.totalorder %v71, 4
    %vm80 = vmand %vm76, %vm78
    %vm81 = vmand %vm77, %vm79
    %vm82 = vcmp.lt.s32.totalorder %v70, 12
    %vm83 = vcmp.lt.s32.totalorder %v71, 12
    %vm84 = vmand %vm80, %vm82
    %vm85 = vmand %vm81, %vm83
    %v86 = vld [vmem:[%s0] sm:$0xff]
    %v87 = vld [vmem:[%s0 + $0x8] sm:$0xff]
    %v88 = vsel %vm84, 1, 0
    %v89 = vsel %vm85, 1, 0
    %vm90 = vcmp.eq.s32.totalorder %v88, 1
    %vm91 = vcmp.eq.s32.totalorder %v89, 1
    %v92 = vsel %vm90, %v86, 0.0
    %v93 = vsel %vm91, %v87, 0.0
    %94 = vst [vmem:[%s2] sm:$0xff] %v92
    %95 = vst [vmem:[%s2 + $0x8] sm:$0xff] %v93
    %v96 = vld [vmem:[%s1] sm:$0xff]
    %v97 = vld [vmem:[%s1 + $0x8] sm:$0xff]
    %v98 = vsel %vm90, %v96, 0.0
    %v99 = vsel %vm91, %v97, 0.0
    %100 = vst [vmem:[%s3] sm:$0xff] %v98
    %101 = vst [vmem:[%s3 + $0x8] sm:$0xff] %v99
  $region21: #{center_cropper_forward.1} parent=0 // pred_fallthru
    _
  // Predicated region
  $region22: #{center_cropper_forward.1} parent=0 // pred_check
    _
  $region23: #{center_cropper_forward.1} parent=0 // pred_check_branch
    %103 = sbr.rel (0) target = $region25
  $region24: #{center_cropper_forward.1} parent=0 // pred_region
    _
  $region25: #{center_cropper_forward.1} parent=0 // pred_fallthru
    _
  // Predicated region
  $region26: #{center_cropper_forward.1} parent=0 // pred_check
    _
  $region27: #{center_cropper_forward.1} parent=0 // pred_check_branch
    %105 = sbr.rel (0) target = $region29
  $region28: #{center_cropper_forward.1} parent=0 // pred_region
    _
  $region29: #{center_cropper_forward.1} parent=0 // pred_fallthru
    _
  // Predicated region
  $region30: #{center_cropper_forward.1} parent=0 // pred_check
    _
  $region31: #{center_cropper_forward.1} parent=0 // pred_check_branch
    %107 = sbr.rel (0) target = $region33
  $region32: #{center_cropper_forward.1} parent=0 // pred_region
    _
  $region33: #{center_cropper_forward.1} parent=0 // pred_fallthru
    _
  // Predicated region
  $region34: #{center_cropper_forward.1} parent=0 // pred_check
    _
  $region35: #{center_cropper_forward.1} parent=0 // pred_check_branch
    %109 = sbr.rel (0) target = $region37
  $region36: #{center_cropper_forward.1} parent=0 // pred_region
    _
  $region37: #{center_cropper_forward.1} parent=0 // pred_fallthru
    _

</llo_original>
